<compile_context>
chip_gen: v7x
topology: tpu7x:2x2x1
jax: 0.10.0
libtpu: 0.0.40
codegen_flags: <defaults>
</compile_context>

<pallas_src>
import functools

import jax
import jax.numpy as jnp
from jax.experimental import pallas as pl
from jax.experimental.pallas import tpu as pltpu

_MIB = 1 << 20


def _round_up(v, m):
    return (v + m - 1) // m * m


def _sublane(dtype):
    # f32 -> 8 rows per vreg, bf16/fp16 -> 16, int8/fp8 -> 32 (sublane packing).
    return 8 * max(1, 4 // jnp.dtype(dtype).itemsize)


def _tpu_vmem_capacity():
    try:
        return int(pltpu.get_tpu_info().vmem_capacity_bytes)
    except Exception:
        return 64 * _MIB  # conservative (v7x-sized); safe on every generation


def _vmem_limit(need_bytes, vmem_cap):
    # Explicit scoped-VMEM limit: need + margin, floored at 16 MiB, capped
    # below physical capacity. Physical VMEM is the cap on every generation
    # (v5e/v6e 128 MiB, v7x 64 MiB), so raising past the default is fine.
    lim = int(need_bytes) + 4 * _MIB
    lim = max(lim, 16 * _MIB)
    lim = min(lim, vmem_cap - 8 * _MIB)
    return int(lim)


# ----------------------------------------------------------------------------
# Kernels
# ----------------------------------------------------------------------------
def _resident_kernel(x_ref, eps_ref, o_ref):
    # Path 1: whole (N, D) tensor resident. Native-dtype blocks, f32 math.
    x = x_ref[...].astype(jnp.float32)
    ssq = jnp.sum(x * x, axis=1, keepdims=True)            # (N, 1)
    eps = eps_ref[...]                                      # (N, 1) f32
    x_norm = jnp.sqrt(ssq)
    scale = eps * pl.reciprocal(jnp.maximum(x_norm, eps), approx=False)
    o_ref[...] = (x * scale).astype(o_ref.dtype)


def _rowtile_kernel(tn, x_ref, eps_ref, o_ref):
    # Path 2: x_ref (tn, D) native dtype; eps_ref (N_pad, 1) f32, fully
    # resident (index map pinned at (0,0)) -> slice our rows, no per-step DMA.
    i = pl.program_id(0)
    x = x_ref[...].astype(jnp.float32)
    ssq = jnp.sum(x * x, axis=1, keepdims=True)             # (tn, 1)
    row0 = pl.multiple_of(i * tn, 8)                        # tn is a multiple of 8
    eps = eps_ref[pl.ds(row0, tn), :]                       # (tn, 1)
    x_norm = jnp.sqrt(ssq)
    scale = eps * pl.reciprocal(jnp.maximum(x_norm, eps), approx=False)
    o_ref[...] = (x * scale).astype(o_ref.dtype)


def _ssq_partial_kernel(d, td, x_ref, out_ref):
    # Path 3a: per-(N-tile, D-tile) partial sum of squares. No accumulator,
    # fully "parallel" grid (both v7x TensorCores stream HBM even for N == 1).
    k = pl.program_id(1)
    x = x_ref[...].astype(jnp.float32)
    # Mask the ragged last D tile (partial-block reads are undefined).
    col = jax.lax.broadcasted_iota(jnp.int32, x.shape, 1) + k * td
    x = jnp.where(col < d, x, 0.0)
    out_ref[0] = jnp.sum(x * x, axis=1, keepdims=True)      # (tn, 1)


def _scale_kernel(x_ref, eps_ref, ssq_ref, o_ref):
    # Path 3b: elementwise scale, tiled over (N-tiles, D-tiles), both parallel.
    x = x_ref[...].astype(jnp.float32)
    eps = eps_ref[...]                                      # (tn, 1) f32
    x_norm = jnp.sqrt(ssq_ref[...])                         # (tn, 1) f32
    scale = eps * pl.reciprocal(jnp.maximum(x_norm, eps), approx=False)
    o_ref[...] = (x * scale).astype(o_ref.dtype)


# ----------------------------------------------------------------------------
# Wrapper
# ----------------------------------------------------------------------------
def l2proj(x_nchw, stdn, alpha, *, block_bytes=None, resident_max_bytes=None):
    """x_nchw: (N, C, H, W) float (f32/bf16/f16); stdn: (N,) ; alpha: scalar."""
    n, c, h, w = x_nchw.shape
    d = c * h * w
    x2d = x_nchw.reshape(n, d)
    if not jnp.issubdtype(x2d.dtype, jnp.floating):
        x2d = x2d.astype(jnp.float32)
    dtype = x2d.dtype                      # HBM blocks & output stay native dtype
    itemsize = jnp.dtype(dtype).itemsize
    sub = _sublane(dtype)                  # 8 (f32) / 16 (bf16, fp16)

    # Per-batch epsilon computed once in the wrapper (kernels never see alpha).
    num_x = jnp.sqrt(jnp.float32(d - 1))
    stdn_arr = jnp.asarray(stdn, jnp.float32).reshape(-1)
    if stdn_arr.shape[0] == 1 and n > 1:
        stdn_arr = jnp.broadcast_to(stdn_arr, (n,))
    eps = (jnp.exp(jnp.asarray(alpha, jnp.float32))
           * stdn_arr.reshape(n, 1) * num_x)                        # (N, 1) f32

    vmem_cap = _tpu_vmem_capacity()
    if block_bytes is None:
        # v7x (64 MiB VMEM, ~3.2 TB/s/TC) wants bigger blocks to amortize the
        # ~0.35 us per-step cost; v5e/v6e (128 MiB) are fine at 4 MiB since we
        # raise vmem_limit_bytes explicitly below.
        block_bytes = 8 * _MIB if vmem_cap <= 64 * _MIB else 4 * _MIB
    if resident_max_bytes is None:
        # grid=(1,) still double-buffers in+out (~4x the block), so keep the
        # single-resident-block cutoff at ~VMEM/6 (10.7 MiB v7x, 21.3 MiB v5e/v6e).
        resident_max_bytes = vmem_cap // 6

    row_bytes = d * itemsize
    x_bytes = n * row_bytes
    out_shape2d = jax.ShapeDtypeStruct((n, d), dtype)

    # ---- Path 2: batch-tiled, single "parallel" axis (megacore on v7x). -----
    if sub * row_bytes <= block_bytes and (n >= 2 * sub or x_bytes > resident_max_bytes):
        tn = max(sub, (block_bytes // row_bytes) // sub * sub)
        if n >= 2 * sub:
            # Keep at least two batch tiles so v7x's second TensorCore has work.
            tn = min(tn, _round_up(pl.cdiv(n, 2), sub))
        tn = min(tn, _round_up(n, sub))
        grid_n = pl.cdiv(n, tn)
        n_pad = grid_n * tn
        # Pad eps rows so the in-kernel slice of the resident eps never goes OOB
        # for a ragged last batch tile (padded rows feed masked-out output rows).
        eps_res = (jnp.ones((n_pad, 1), jnp.float32).at[:n].set(eps)
                   if n_pad != n else eps)
        need = 4 * tn * row_bytes + n_pad * 512
        out2d = pl.pallas_call(
            functools.partial(_rowtile_kernel, tn),
            out_shape=out_shape2d,
            grid=(grid_n,),
            in_specs=[
                pl.BlockSpec((tn, d), lambda i: (i, 0)),
                pl.BlockSpec((n_pad, 1), lambda i: (0, 0)),   # eps fully resident
            ],
            out_specs=pl.BlockSpec((tn, d), lambda i: (i, 0)),
            compiler_params=pltpu.CompilerParams(
                dimension_semantics=("parallel",),
                vmem_limit_bytes=_vmem_limit(need, vmem_cap)),
        )(x2d, eps_res)
        return out2d.reshape(n, c, h, w)

    # ---- Path 1: whole tensor as one resident block (2 HBM passes). ---------
    if x_bytes <= resident_max_bytes:
        out2d = pl.pallas_call(
            _resident_kernel,
            out_shape=out_shape2d,
            grid=(1,),
            in_specs=[
                pl.BlockSpec((n, d), lambda i: (0, 0)),
                pl.BlockSpec((n, 1), lambda i: (0, 0)),
            ],
            out_specs=pl.BlockSpec((n, d), lambda i: (0, 0)),
            compiler_params=pltpu.CompilerParams(
                dimension_semantics=("arbitrary",),
                vmem_limit_bytes=_vmem_limit(4 * x_bytes, vmem_cap)),
        )(x2d, eps)
        return out2d.reshape(n, c, h, w)

    # ---- Path 3: huge rows -> two fully "parallel" passes over (N, D) tiles. -
    # (a) partial sum-of-squares per (row-tile, D-tile); (b) scale. 3 HBM passes
    # total (read, read+write), no D padding of x, no accumulator state.
    tn3 = n if n <= sub else sub
    td = max(128, (block_bytes // max(tn3 * itemsize, 1)) // 128 * 128)
    td = min(td, _round_up(d, 128))
    grid_n = pl.cdiv(n, tn3)
    grid_d = pl.cdiv(d, td)
    limit3 = _vmem_limit(4 * tn3 * td * itemsize, vmem_cap)

    partials = pl.pallas_call(
        functools.partial(_ssq_partial_kernel, d, td),
        out_shape=jax.ShapeDtypeStruct((grid_d, n, 1), jnp.float32),
        grid=(grid_n, grid_d),
        in_specs=[pl.BlockSpec((tn3, td), lambda i, k: (i, k))],
        out_specs=pl.BlockSpec((1, tn3, 1), lambda i, k: (k, i, 0)),
        compiler_params=pltpu.CompilerParams(
            dimension_semantics=("parallel", "parallel"),
            vmem_limit_bytes=limit3),
    )(x2d)
    ssq = jnp.sum(partials, axis=0)            # (N, 1) f32 — tiny XLA reduce

    out2d = pl.pallas_call(
        _scale_kernel,
        out_shape=out_shape2d,
        grid=(grid_n, grid_d),
        in_specs=[
            pl.BlockSpec((tn3, td), lambda i, k: (i, k)),
            pl.BlockSpec((tn3, 1), lambda i, k: (i, 0)),
            pl.BlockSpec((tn3, 1), lambda i, k: (i, 0)),
        ],
        out_specs=pl.BlockSpec((tn3, td), lambda i, k: (i, k)),
        compiler_params=pltpu.CompilerParams(
            dimension_semantics=("parallel", "parallel"),
            vmem_limit_bytes=limit3),
    )(x2d, eps, ssq)
    return out2d.reshape(n, c, h, w)


# ----------------------------------------------------------------------------
# Reference & tests
# ----------------------------------------------------------------------------
def _reference(x, stdn, alpha):
    n, c, h, w = x.shape
    d = c * h * w
    xf = x.astype(jnp.float32)
    num_x = jnp.sqrt(jnp.float32(d - 1))
    eps = (jnp.exp(jnp.asarray(alpha, jnp.float32))
           * jnp.asarray(stdn, jnp.float32).reshape(n) * num_x).reshape(n, 1, 1, 1)
    x_norm = jnp.sqrt(jnp.sum(xf.reshape(n, -1) ** 2, axis=1)).reshape(n, 1, 1, 1)
    return xf * (eps / jnp.maximum(x_norm, eps))


if __name__ == "__main__":
    key = jax.random.PRNGKey(0)
    kx, ks, kx2, ks2, kx3, ks3 = jax.random.split(key, 6)
    alpha = jnp.asarray(0.1, dtype=jnp.float32)   # learnable scalar in SRResCGAN

    # --- f32, training-patch shape -> path 1 (chip-derived budgets). ---------
    N, C, H, W = 2, 4, 16, 16
    x = jax.random.normal(kx, (N, C, H, W), dtype=jnp.float32)
    stdn = jax.random.uniform(ks, (N,), dtype=jnp.float32, minval=0.01, maxval=0.2)
    ref = _reference(x, stdn, alpha)

    out = jax.block_until_ready(l2proj(x, stdn, alpha))
    assert out.shape == (N, C, H, W) and out.dtype == jnp.float32
    assert jnp.allclose(out, ref, atol=1e-5, rtol=1e-5), "path-1 mismatch"

    # --- f32, force the two-pass huge-D path (3) at a small size. ------------
    out3p = jax.block_until_ready(
        l2proj(x, stdn, alpha, block_bytes=4096, resident_max_bytes=1024))
    assert jnp.allclose(out3p, ref, atol=1e-5, rtol=1e-5), "path-3 (f32) mismatch"

    # --- f32, force the batch-tiled path (2). ---------------------------------
    N2, C2, H2, W2 = 16, 1, 8, 16
    x2 = jax.random.normal(kx2, (N2, C2, H2, W2), dtype=jnp.float32)
    stdn2 = jax.random.uniform(ks2, (N2,), dtype=jnp.float32, minval=0.01, maxval=0.2)
    ref2 = _reference(x2, stdn2, alpha)
    out2 = jax.block_until_ready(
        l2proj(x2, stdn2, alpha, block_bytes=4096, resident_max_bytes=1024))
    assert jnp.allclose(out2, ref2, atol=1e-5, rtol=1e-5), "path-2 (f32) mismatch"

    # --- bf16 input: native-dtype HBM blocks / output (paths 2 and 3). -------
    N3, C3, H3, W3 = 32, 1, 8, 16
    x3 = jax.random.normal(kx3, (N3, C3, H3, W3), dtype=jnp.float32).astype(jnp.bfloat16)
    stdn3 = jax.random.uniform(ks3, (N3,), dtype=jnp.float32, minval=0.01, maxval=0.2)
    ref3 = _reference(x3, stdn3, alpha)

    out_b2 = jax.block_until_ready(
        l2proj(x3, stdn3, alpha, block_bytes=4096, resident_max_bytes=512))
    assert out_b2.dtype == jnp.bfloat16
    assert jnp.allclose(out_b2.astype(jnp.float32), ref3, atol=3e-2, rtol=3e-2), \
        "path-2 (bf16) mismatch"

    out_b3 = jax.block_until_ready(
        l2proj(x3, stdn3, alpha, block_bytes=2048, resident_max_bytes=512))
    assert out_b3.dtype == jnp.bfloat16
    assert jnp.allclose(out_b3.astype(jnp.float32), ref3, atol=3e-2, rtol=3e-2), \
        "path-3 (bf16) mismatch"

    print("KERNEL_OK")
</pallas_src>

<mosaic_0001>
module attributes {stable_mosaic.version = 11 : i64} {
  func.func @_resident_kernel(%arg0: i32, %arg1: memref<2x1024xf32, #tpu.memory_space<vmem>>, %arg2: memref<2x1xf32, #tpu.memory_space<vmem>>, %arg3: memref<2x1024xf32, #tpu.memory_space<vmem>>) attributes {dimension_semantics = [#tpu.dimension_semantics<arbitrary>], iteration_bounds = array<i64: 1>, scalar_prefetch = 0 : i64, scratch_operands = 0 : i64, tpu.core_type = #tpu.core_type<tc>, window_params = [{pipeline_mode = #tpu.pipeline_mode<synchronous>, transform_indices = @transform_0, window_bounds = array<i64: 2, 1024>}, {pipeline_mode = #tpu.pipeline_mode<synchronous>, transform_indices = @transform_1, window_bounds = array<i64: 2, 1>}, {pipeline_mode = #tpu.pipeline_mode<synchronous>, transform_indices = @transform_2, window_bounds = array<i64: 2, 1024>}]} {
    %c0 = arith.constant 0 : index
    %c0_0 = arith.constant 0 : index
    %0 = vector.load %arg1[%c0, %c0_0] : memref<2x1024xf32, #tpu.memory_space<vmem>>, vector<2x1024xf32>
    %1 = arith.mulf %0, %0 : vector<2x1024xf32>
    %cst = arith.constant dense<0.000000e+00> : vector<2xf32>
    %2 = vector.multi_reduction <add>, %1, %cst [1] : vector<2x1024xf32> to vector<2xf32>
    %3 = vector.shape_cast %2 : vector<2xf32> to vector<2x1xf32>
    %c0_1 = arith.constant 0 : index
    %c0_2 = arith.constant 0 : index
    %4 = vector.load %arg2[%c0_1, %c0_2] : memref<2x1xf32, #tpu.memory_space<vmem>>, vector<2x1xf32>
    %5 = math.sqrt %3 : vector<2x1xf32>
    %6 = arith.maximumf %5, %4 : vector<2x1xf32>
    %7 = tpu.reciprocal %6 : vector<2x1xf32> -> vector<2x1xf32>
    %8 = arith.mulf %4, %7 : vector<2x1xf32>
    %9 = vector.broadcast %8 : vector<2x1xf32> to vector<2x1024xf32>
    %10 = arith.mulf %0, %9 : vector<2x1024xf32>
    %c0_3 = arith.constant 0 : index
    %c0_4 = arith.constant 0 : index
    %11 = vector.load %arg3[%c0_3, %c0_4] : memref<2x1024xf32, #tpu.memory_space<vmem>>, vector<2x1024xf32>
    tpu.vector_store %arg3[%c0_3, %c0_4], %10 {strides = array<i32>} : memref<2x1024xf32, #tpu.memory_space<vmem>>, vector<2x1024xf32>,
    return
  }
  func.func @transform_0(%arg0: i32) -> (i32, i32) {
    %c0_i32 = arith.constant 0 : i32
    %c0_i32_0 = arith.constant 0 : i32
    %c0_i32_1 = arith.constant 0 : i32
    return %c0_i32, %c0_i32_0 : i32, i32
  }
  func.func @transform_1(%arg0: i32) -> (i32, i32) {
    %c0_i32 = arith.constant 0 : i32
    %c0_i32_0 = arith.constant 0 : i32
    %c0_i32_1 = arith.constant 0 : i32
    return %c0_i32, %c0_i32_0 : i32, i32
  }
  func.func @transform_2(%arg0: i32) -> (i32, i32) {
    %c0_i32 = arith.constant 0 : i32
    %c0_i32_0 = arith.constant 0 : i32
    %c0_i32_1 = arith.constant 0 : i32
    return %c0_i32, %c0_i32_0 : i32, i32
  }
}

</mosaic_0001>

<llo_original>
// kernel: tpu_custom_call.1
$region0: #{tpu_custom_call.1}
  #allocation0 [shape = 'u32[]', space=smem, size = 0x4, offset = 0x4, fixed_abs, tag = 'smem constant byte address 0x4 - core index']
  #allocation1 [shape = 'u32[144,128]{1,0:T(1,128)}', space=vmem, size = 0x12000, scoped, tag = 'internal scratch']
  %s0 = inlined_call_operand.hbm [shape: f32[2,1024], index: 0, kind: input, shape index: {}]
  %s1 = inlined_call_operand.vmem [shape: f32[2,1], index: 1, kind: input, shape index: {}]
  %s2 = inlined_call_operand.hbm [shape: f32[2,1024], index: 2, kind: output, shape index: {}]
  %s3 = sld [smem:[#allocation0]]
  $region22: #{tpu_custom_call.1} parent=0
    _
  %s5 = ssub.s32 1, %s3
  %s6 = scalar_select 0, %s5, %s3
  $region1: #{tpu_custom_call.1} parent=0
    #allocation2 [shape = 'u8[8192]{0}', space=vmem, size = 0x2000, scoped, tag = 'input window, operand 0, single buffered']
    #allocation3 [shape = 's32[1]{0}', space=sflag, size = 0x4, scoped, tag = 'scoped memory for tpu_custom_call.1']
    #allocation4 [shape = 's32[1]{0}', space=sflag, size = 0x4, scoped, tag = 'scoped memory for tpu_custom_call.1']
    #allocation5 [shape = 'u8[8192]{0}', space=vmem, size = 0x2000, scoped, tag = 'output window, operand 0, single buffered']
    %7 = vsyncpa [#allocation3], 0
    %8 = vsyncpa [#allocation4], 0
    // Predicated region
    $region2: #{tpu_custom_call.1} parent=1 // pred_check
      _
    $region3: #{tpu_custom_call.1} parent=1 // pred_check_branch
      %10 = sbr.rel (0) target = $region5
    $region4: #{tpu_custom_call.1} parent=1 // pred_region
      %s12 = ssub.s32 256, 256
      %13 = vsyncadd [#allocation3], %s12
      %s15 = sshll.u32 [#allocation2], 4
      %s16 = int_to_ptr.vmem [resolvable:$true] %s15
      %18 = dma.hbm_to_vmem [thread:$0]  %s0, 256, %s16, [#allocation3]
    $region5: #{tpu_custom_call.1} parent=1 // pred_fallthru
      _
    // Predicated region
    $region6: #{tpu_custom_call.1} parent=1 // pred_check
      _
    $region7: #{tpu_custom_call.1} parent=1 // pred_check_branch
      %20 = sbr.rel (0) target = $region9
    $region8: #{tpu_custom_call.1} parent=1 // pred_region
      _
    $region9: #{tpu_custom_call.1} parent=1 // pred_fallthru
      _
    // Predicated region
    $region10: #{tpu_custom_call.1} parent=1 // pred_check
      _
    $region11: #{tpu_custom_call.1} parent=1 // pred_check_branch
      %22 = sbr.rel (0) target = $region13
    $region12: #{tpu_custom_call.1} parent=1 // pred_region
      %23 = dma.done [#allocation3], 256
    $region13: #{tpu_custom_call.1} parent=1 // pred_fallthru
      _
    %v24 = vld [vmem:[#allocation2] sm:$0xff]
    %v25 = vld [vmem:[#allocation2 + $0x8] sm:$0xff]
    %v26 = vmul.f32 %v24, %v24
    %v27 = vmul.f32 %v25, %v25
    %v30 = vcombine.high %v26, %v26
    %v32 = vunpack.c.l.s4 1983009808
    %v33 = vunpack.c.0.s8 %v32
    %v34 = vlaneseq
    %v35 = vshrl.u32 %v34, 7
    %v36 = vsub.s32 %v33, %v35
    %v37 = vrot.slane %v26, %v36
    %v39 = vunpack.c.l.s4 1983009808
    %v40 = vunpack.c.0.s8 %v39
    %v41 = vlaneseq
    %v42 = vshrl.u32 %v41, 7
    %v43 = vsub.s32 %v40, %v42
    %v44 = vrot.slane %v30, %v43
    %v45 = vcombine.high %v37, %v37
    %v46 = vcombine.high %v44, %v44
    %v47 = vcombine.high %v27, %v27
    %v49 = vunpack.c.l.s4 1983009808
    %v50 = vunpack.c.0.s8 %v49
    %v51 = vlaneseq
    %v52 = vshrl.u32 %v51, 7
    %v53 = vsub.s32 %v50, %v52
    %v54 = vrot.slane %v27, %v53
    %v56 = vunpack.c.l.s4 1983009808
    %v57 = vunpack.c.0.s8 %v56
    %v58 = vlaneseq
    %v59 = vshrl.u32 %v58, 7
    %v60 = vsub.s32 %v57, %v59
    %v61 = vrot.slane %v47, %v60
    %v62 = vcombine.high %v54, %v54
    %v63 = vcombine.high %v61, %v61
    %vm72 = vcmask 1041408
    %v73 = vsel %vm72, %v37, 0.0
    %v74 = vsel %vm72, %v45, 0.0
    %v75 = vadd.f32 %v73, %v74
    %v76 = vsel %vm72, %v44, 0.0
    %v77 = vadd.f32 %v75, %v76
    %v78 = vsel %vm72, %v46, 0.0
    %v79 = vadd.f32 %v77, %v78
    %v80 = vsel %vm72, %v54, 0.0
    %v81 = vadd.f32 %v79, %v80
    %v82 = vsel %vm72, %v62, 0.0
    %v83 = vadd.f32 %v81, %v82
    %v84 = vsel %vm72, %v61, 0.0
    %v85 = vadd.f32 %v83, %v84
    %v86 = vsel %vm72, %v63, 0.0
    %v87 = vadd.f32 %v85, %v86
    %88 = vadd.xlane.f32.xlu0 %v87
    %v89 = vpop.xlane.xlu0 %88
    %v90 = vld [vmem:[%s1] sm:$0x3]
    %v91 = vrsqrt.pop %v89
    %v92 = vmul.f32 %v89, %v91
    %vm93 = vcmp.eq.f32.partialorder %v89, inf
    %v94 = vsel %vm93, %v89, %v92
    %vm95 = vcmp.eq.f32.partialorder %v89, 0.0
    %v96 = vand.u32 %v89, 2147483648
    %v97 = vsel %vm95, %v96, %v94
    %v98 = vmax.f32 %v97, %v90
    %v99 = vrcp.pop %v98
    %v100 = vmul.f32 %v90, %v99
    %102 = vset.pattern.permute.xlu0 0
    %103 = vperm.xlu0 %102, %v100
    %v104 = vpop.permute.xlu0 %103
    %v106 = vunpack.c.l.s4 269488144
    %v107 = vunpack.c.0.s8 %v106
    %v108 = vlaneseq
    %v109 = vshrl.u32 %v108, 7
    %v110 = vsub.s32 %v107, %v109
    %v111 = vrot.slane %v104, %v110
    %v113 = vmul.f32 %v24, %v111
    %v114 = vmul.f32 %v25, %v111
    %115 = vst [vmem:[#allocation5] sm:$0xff] %v113
    %116 = vst [vmem:[#allocation5 + $0x8] sm:$0xff] %v114
    // Predicated region
    $region14: #{tpu_custom_call.1} parent=1 // pred_check
      _
    $region15: #{tpu_custom_call.1} parent=1 // pred_check_branch
      %118 = sbr.rel (0) target = $region17
    $region16: #{tpu_custom_call.1} parent=1 // pred_region
      %s120 = ssub.s32 256, 256
      %121 = vsyncadd [#allocation4], %s120
      %s123 = sshll.u32 [#allocation5], 4
      %s124 = int_to_ptr.vmem [resolvable:$true] %s123
      %126 = dma.vmem_to_hbm [thread:$0]  %s124, 256, %s2, [#allocation4]
    $region17: #{tpu_custom_call.1} parent=1 // pred_fallthru
      _
    // Predicated region
    $region18: #{tpu_custom_call.1} parent=1 // pred_check
      _
    $region19: #{tpu_custom_call.1} parent=1 // pred_check_branch
      %128 = sbr.rel (0) target = $region21
    $region20: #{tpu_custom_call.1} parent=1 // pred_region
      %129 = dma.done [#allocation4], 256
    $region21: #{tpu_custom_call.1} parent=1 // pred_fallthru
      _
    %130 = vsyncpa [#allocation3], 1
    %131 = vsyncpa [#allocation4], 1

</llo_original>
